<compile_context>
chip_gen: v7x
topology: tpu7x:2x2x1
jax: 0.10.0
libtpu: 0.0.40
codegen_flags: <defaults>
</compile_context>

<pallas_src>
import math

import jax
import jax.numpy as jnp
from jax import lax
from jax.experimental import pallas as pl
from jax.experimental.pallas import tpu as pltpu

_LANE = 128
_SUBLANE = {1: 32, 2: 16, 4: 8}   # min sublane tile by itemsize


def _cdiv(a, b):
    return -(-a // b)


def _round_up(x, m):
    return _cdiv(x, m) * m


def _pick_k_tile(K):
    """Largest 128-multiple divisor of K that is <= 1024 (reduction axis)."""
    q = K // _LANE
    best = 1
    for d in range(1, q + 1):
        if q % d == 0 and _LANE * d <= 1024:
            best = d
    return _LANE * best


def _pick_n_tile(N):
    """Largest 128-multiple divisor of N <= 512, keeping >= 2 lane tiles when
    N >= 512 so the 'parallel' j axis can be sharded across v7x's 2 TCs."""
    q = N // _LANE
    best = 1
    for d in range(1, q + 1):
        if q % d:
            continue
        if _LANE * d > 512:
            continue
        if q >= 4 and q // d < 2:
            continue
        best = d
    return _LANE * best


# ---------------------------------------------------------------------------
# Kernels
# ---------------------------------------------------------------------------

def _noisy_linear_train_factored_kernel(x_ref, wmu_ref, wsig_ref, ein_ref,
                                        eout_ref, b_ref, o_ref,
                                        acc_mu, acc_sig):
    # y = x @ w_mu + eps_out * ((x * eps_in) @ w_sigma) + bias
    # VPU cost per step is O(tm*tk) (row broadcast); MXU work is doubled,
    # which is free slack in the small-batch regime.
    k = pl.program_id(2)

    @pl.when(k == 0)
    def _():
        acc_mu[...] = jnp.zeros_like(acc_mu)
        acc_sig[...] = jnp.zeros_like(acc_sig)

    x = x_ref[...]
    acc_mu[...] += lax.dot_general(
        x, wmu_ref[...],
        dimension_numbers=(((1,), (0,)), ((), ())),
        preferred_element_type=jnp.float32)
    acc_sig[...] += lax.dot_general(
        x * ein_ref[...], wsig_ref[...],
        dimension_numbers=(((1,), (0,)), ((), ())),
        preferred_element_type=jnp.float32)

    @pl.when(k == pl.num_programs(2) - 1)
    def _():
        eo = eout_ref[...].astype(jnp.float32)
        b = b_ref[...].astype(jnp.float32)
        o_ref[...] = (acc_mu[...] + eo * acc_sig[...] + b).astype(o_ref.dtype)


def _noisy_linear_train_composed_kernel(x_ref, wmu_ref, wsig_ref, ein_ref,
                                        eout_ref, b_ref, o_ref, acc_ref):
    # Large-batch path: compose the noisy (tk, tn) weight tile on the VPU
    # (rank-1 factorized noise) and do a single MXU pass.
    k = pl.program_id(2)

    @pl.when(k == 0)
    def _():
        acc_ref[...] = jnp.zeros_like(acc_ref)

    w = wmu_ref[...] + wsig_ref[...] * (ein_ref[...] * eout_ref[...])
    acc_ref[...] += lax.dot_general(
        x_ref[...], w,
        dimension_numbers=(((1,), (0,)), ((), ())),
        preferred_element_type=jnp.float32)

    @pl.when(k == pl.num_programs(2) - 1)
    def _():
        o_ref[...] = (acc_ref[...] + b_ref[...].astype(jnp.float32)
                      ).astype(o_ref.dtype)


def _noisy_linear_eval_kernel(x_ref, wmu_ref, b_ref, o_ref, acc_ref):
    k = pl.program_id(2)

    @pl.when(k == 0)
    def _():
        acc_ref[...] = jnp.zeros_like(acc_ref)

    acc_ref[...] += lax.dot_general(
        x_ref[...], wmu_ref[...],
        dimension_numbers=(((1,), (0,)), ((), ())),
        preferred_element_type=jnp.float32)

    @pl.when(k == pl.num_programs(2) - 1)
    def _():
        o_ref[...] = (acc_ref[...] + b_ref[...].astype(jnp.float32)
                      ).astype(o_ref.dtype)


# ---------------------------------------------------------------------------
# One-time parameter preparation (padding + transpose done ONCE, not per call)
# ---------------------------------------------------------------------------

def prepare_noisy_linear(weight_mu, weight_sigma, eps_in, eps_out,
                         bias_mu, bias_sigma, bias_epsilon, *, dtype=None):
    out_f, in_f = weight_mu.shape
    dtype = jnp.dtype(dtype) if dtype is not None else jnp.dtype(weight_mu.dtype)
    K = _round_up(in_f, _LANE)
    N = _round_up(out_f, _LANE)
    tk = _pick_k_tile(K)
    tn = _pick_n_tile(N)

    def pad2(a, shape):
        a = jnp.asarray(a, dtype)
        out = jnp.zeros(shape, dtype)
        return out.at[:a.shape[0], :a.shape[1]].set(a)

    return dict(
        in_features=in_f, out_features=out_f, dtype=dtype,
        K=K, N=N, tk=tk, tn=tn,
        wmu_kn=pad2(weight_mu.T, (K, N)),          # MXU-natural (K, N) layout
        wsig_kn=pad2(weight_sigma.T, (K, N)),
        ein_row=pad2(jnp.reshape(eps_in, (1, -1)), (1, K)),
        ein_col=pad2(jnp.reshape(eps_in, (-1, 1)), (K, 1)),
        eout_row=pad2(jnp.reshape(eps_out, (1, -1)), (1, N)),
        bias_train=pad2(jnp.reshape(bias_mu + bias_sigma * bias_epsilon,
                                    (1, -1)), (1, N)),
        bias_eval=pad2(jnp.reshape(bias_mu, (1, -1)), (1, N)),
    )


# ---------------------------------------------------------------------------
# Forward
# ---------------------------------------------------------------------------

def noisy_linear_forward(x, prep, *, training=True, variant="auto"):
    B, in_f = x.shape
    assert in_f == prep["in_features"], "in_features mismatch"
    dtype = prep["dtype"]
    K, N = prep["K"], prep["N"]
    tk, tn = prep["tk"], prep["tn"]
    out_f = prep["out_features"]
    itemsize = dtype.itemsize
    sub = _SUBLANE.get(itemsize, 8)

    # Batch tiling: tm <= 256, minimal zero padding (balanced i tiles).
    n_i = _cdiv(B, 256)
    tm = _round_up(_cdiv(B, n_i), sub)
    M = n_i * tm

    x = x.astype(dtype)
    if (B, in_f) != (M, K):
        xp = jnp.zeros((M, K), dtype).at[:B, :in_f].set(x)
    else:
        xp = x                                     # fast path: no per-call copy

    grid = (M // tm, N // tn, K // tk)
    x_spec = pl.BlockSpec((tm, tk), lambda i, j, k: (i, k))
    w_spec = pl.BlockSpec((tk, tn), lambda i, j, k: (k, j))
    row_n_spec = pl.BlockSpec((1, tn), lambda i, j, k: (0, j))
    row_k_spec = pl.BlockSpec((1, tk), lambda i, j, k: (0, k))
    col_k_spec = pl.BlockSpec((tk, 1), lambda i, j, k: (k, 0))
    o_spec = pl.BlockSpec((tm, tn), lambda i, j, k: (i, j))

    if not training:
        variant = "eval"
    elif variant == "auto":
        variant = "factored" if tm <= 128 else "composed"
    assert variant in ("eval", "factored", "composed")

    n_w = 1 if variant == "eval" else 2
    n_acc = 2 if variant == "factored" else 1
    flops_mult = 2 if variant == "factored" else 1

    # VMEM limit from actual double-buffered footprint (+headroom), <= 32 MiB
    # so it is safe on v7x (64 MiB physical / 32 MiB default scoped per TC).
    footprint = (2 * (tm * tk + n_w * tk * tn + 2 * tk + 2 * tn + tm * tn)
                 * itemsize + n_acc * tm * tn * 4)
    vmem_limit = int(min(32 << 20, max(16 << 20, footprint * 3 // 2 + (2 << 20))))

    cparams = pltpu.CompilerParams(
        dimension_semantics=("parallel", "parallel", "arbitrary"),
        vmem_limit_bytes=vmem_limit)
    cost = pl.CostEstimate(
        flops=2 * M * N * K * flops_mult,
        transcendentals=0,
        bytes_accessed=(M * K + n_w * K * N + 4 * N + M * N) * itemsize)
    common = dict(out_shape=jax.ShapeDtypeStruct((M, N), dtype),
                  compiler_params=cparams, cost_estimate=cost)

    if variant == "eval":
        yp = pl.pallas_call(
            _noisy_linear_eval_kernel,
            grid_spec=pltpu.PrefetchScalarGridSpec(
                num_scalar_prefetch=0, grid=grid,
                in_specs=[x_spec, w_spec, row_n_spec],
                out_specs=o_spec,
                scratch_shapes=[pltpu.VMEM((tm, tn), jnp.float32)]),
            **common,
        )(xp, prep["wmu_kn"], prep["bias_eval"])
    elif variant == "factored":
        yp = pl.pallas_call(
            _noisy_linear_train_factored_kernel,
            grid_spec=pltpu.PrefetchScalarGridSpec(
                num_scalar_prefetch=0, grid=grid,
                in_specs=[x_spec, w_spec, w_spec,
                          row_k_spec, row_n_spec, row_n_spec],
                out_specs=o_spec,
                scratch_shapes=[pltpu.VMEM((tm, tn), jnp.float32)] * 2),
            **common,
        )(xp, prep["wmu_kn"], prep["wsig_kn"], prep["ein_row"],
          prep["eout_row"], prep["bias_train"])
    else:  # composed (large-batch / compute-bound)
        yp = pl.pallas_call(
            _noisy_linear_train_composed_kernel,
            grid_spec=pltpu.PrefetchScalarGridSpec(
                num_scalar_prefetch=0, grid=grid,
                in_specs=[x_spec, w_spec, w_spec,
                          col_k_spec, row_n_spec, row_n_spec],
                out_specs=o_spec,
                scratch_shapes=[pltpu.VMEM((tm, tn), jnp.float32)]),
            **common,
        )(xp, prep["wmu_kn"], prep["wsig_kn"], prep["ein_col"],
          prep["eout_row"], prep["bias_train"])

    if (M, N) != (B, out_f):
        yp = yp[:B, :out_f]
    return yp


def noisy_linear(x, weight_mu, weight_sigma, eps_in, eps_out,
                 bias_mu, bias_sigma, bias_epsilon, *,
                 training=True, variant="auto"):
    """One-shot convenience wrapper (prefer prepare_noisy_linear + forward)."""
    prep = prepare_noisy_linear(weight_mu, weight_sigma, eps_in, eps_out,
                                bias_mu, bias_sigma, bias_epsilon)
    return noisy_linear_forward(x, prep, training=training, variant=variant)


# ---------------------------------------------------------------------------
# Parameter / noise construction (mirrors reset_parameters / reset_noise).
# Host-side init glue in plain JAX; not part of the forward kernel.
# ---------------------------------------------------------------------------

def _scale_noise(key, size):
    v = jax.random.normal(key, (size,), dtype=jnp.float32)
    return jnp.sign(v) * jnp.sqrt(jnp.abs(v))


def init_noisy_linear(key, in_features, out_features, std_init=0.5):
    k_wmu, k_bmu, k_ein, k_eout = jax.random.split(key, 4)
    mu_range = 1.0 / math.sqrt(in_features)

    weight_mu = jax.random.uniform(
        k_wmu, (out_features, in_features), jnp.float32, -mu_range, mu_range)
    weight_sigma = jnp.full((out_features, in_features),
                            std_init / math.sqrt(in_features), jnp.float32)
    bias_mu = jax.random.uniform(
        k_bmu, (out_features,), jnp.float32, -mu_range, mu_range)
    bias_sigma = jnp.full((out_features,),
                          std_init / math.sqrt(out_features), jnp.float32)

    eps_in = _scale_noise(k_ein, in_features)
    eps_out = _scale_noise(k_eout, out_features)
    return dict(weight_mu=weight_mu, weight_sigma=weight_sigma,
                bias_mu=bias_mu, bias_sigma=bias_sigma,
                eps_in=eps_in, eps_out=eps_out, bias_epsilon=eps_out)


if __name__ == "__main__":
    B, IN_F, OUT_F = 8, 32, 64
    key = jax.random.PRNGKey(0)
    k_params, k_x = jax.random.split(key)

    p = init_noisy_linear(k_params, IN_F, OUT_F, std_init=0.5)
    x = jax.random.normal(k_x, (B, IN_F), dtype=jnp.float32)

    # Prepare padded / transposed parameters once (amortized across calls).
    prep = prepare_noisy_linear(p["weight_mu"], p["weight_sigma"],
                                p["eps_in"], p["eps_out"],
                                p["bias_mu"], p["bias_sigma"],
                                p["bias_epsilon"])

    y_train = noisy_linear_forward(x, prep, training=True)              # factored
    y_train_c = noisy_linear_forward(x, prep, training=True,
                                     variant="composed")                # composed
    y_eval = noisy_linear_forward(x, prep, training=False)              # mu-only
    jax.block_until_ready((y_train, y_train_c, y_eval))

    # Pure-JAX reference (full outer-product epsilon, like the PyTorch module).
    weight_epsilon = jnp.outer(p["eps_out"], p["eps_in"])
    w_noisy = p["weight_mu"] + p["weight_sigma"] * weight_epsilon
    b_noisy = p["bias_mu"] + p["bias_sigma"] * p["bias_epsilon"]
    ref_train = x @ w_noisy.T + b_noisy
    ref_eval = x @ p["weight_mu"].T + p["bias_mu"]

    assert jnp.allclose(y_train, ref_train, atol=1e-5, rtol=1e-5), "train (factored) mismatch"
    assert jnp.allclose(y_train_c, ref_train, atol=1e-5, rtol=1e-5), "train (composed) mismatch"
    assert jnp.allclose(y_eval, ref_eval, atol=1e-5, rtol=1e-5), "eval mismatch"

    print("KERNEL_OK")
</pallas_src>

<mosaic_0001>
module attributes {stable_mosaic.version = 11 : i64} {
  func.func @_noisy_linear_train_factored_kernel(%arg0: i32, %arg1: i32, %arg2: i32, %arg3: memref<8x128xf32, #tpu.memory_space<vmem>>, %arg4: memref<128x128xf32, #tpu.memory_space<vmem>>, %arg5: memref<128x128xf32, #tpu.memory_space<vmem>>, %arg6: memref<1x128xf32, #tpu.memory_space<vmem>>, %arg7: memref<1x128xf32, #tpu.memory_space<vmem>>, %arg8: memref<1x128xf32, #tpu.memory_space<vmem>>, %arg9: memref<8x128xf32, #tpu.memory_space<vmem>>, %arg10: memref<8x128xf32, #tpu.memory_space<vmem>>, %arg11: memref<8x128xf32, #tpu.memory_space<vmem>>) attributes {dimension_semantics = [#tpu.dimension_semantics<parallel>, #tpu.dimension_semantics<parallel>, #tpu.dimension_semantics<arbitrary>], iteration_bounds = array<i64: 1, 1, 1>, scalar_prefetch = 0 : i64, scratch_operands = 2 : i64, tpu.core_type = #tpu.core_type<tc>, window_params = [{transform_indices = @transform_0, window_bounds = array<i64: 8, 128>}, {transform_indices = @transform_1, window_bounds = array<i64: 128, 128>}, {transform_indices = @transform_2, window_bounds = array<i64: 128, 128>}, {transform_indices = @transform_3, window_bounds = array<i64: 1, 128>}, {transform_indices = @transform_4, window_bounds = array<i64: 1, 128>}, {transform_indices = @transform_5, window_bounds = array<i64: 1, 128>}, {transform_indices = @transform_6, window_bounds = array<i64: 8, 128>}]} {
    %c0_i32 = arith.constant 0 : i32
    %0 = arith.cmpi eq, %arg2, %c0_i32 : i32
    %1 = arith.extui %0 : i1 to i32
    %c0_i32_0 = arith.constant 0 : i32
    %2 = arith.cmpi ne, %1, %c0_i32_0 : i32
    scf.if %2 {
      %cst_19 = arith.constant 0.000000e+00 : f32
      %20 = vector.broadcast %cst_19 : f32 to vector<8x128xf32>
      %c0_20 = arith.constant 0 : index
      %c0_21 = arith.constant 0 : index
      %21 = vector.load %arg10[%c0_20, %c0_21] : memref<8x128xf32, #tpu.memory_space<vmem>>, vector<8x128xf32>
      tpu.vector_store %arg10[%c0_20, %c0_21], %20 {strides = array<i32>} : memref<8x128xf32, #tpu.memory_space<vmem>>, vector<8x128xf32>,
      %cst_22 = arith.constant 0.000000e+00 : f32
      %22 = vector.broadcast %cst_22 : f32 to vector<8x128xf32>
      %c0_23 = arith.constant 0 : index
      %c0_24 = arith.constant 0 : index
      %23 = vector.load %arg11[%c0_23, %c0_24] : memref<8x128xf32, #tpu.memory_space<vmem>>, vector<8x128xf32>
      tpu.vector_store %arg11[%c0_23, %c0_24], %22 {strides = array<i32>} : memref<8x128xf32, #tpu.memory_space<vmem>>, vector<8x128xf32>,
    } else {
    }
    %c0 = arith.constant 0 : index
    %c0_1 = arith.constant 0 : index
    %3 = vector.load %arg3[%c0, %c0_1] : memref<8x128xf32, #tpu.memory_space<vmem>>, vector<8x128xf32>
    %c0_2 = arith.constant 0 : index
    %c0_3 = arith.constant 0 : index
    %4 = vector.load %arg10[%c0_2, %c0_3] : memref<8x128xf32, #tpu.memory_space<vmem>>, vector<8x128xf32>
    %c0_4 = arith.constant 0 : index
    %c0_5 = arith.constant 0 : index
    %5 = vector.load %arg4[%c0_4, %c0_5] : memref<128x128xf32, #tpu.memory_space<vmem>>, vector<128x128xf32>
    %cst = arith.constant dense<0.000000e+00> : vector<8x128xf32>
    %6 = tpu.matmul %3, %5, %cst {dimension_numbers = #tpu.dot_dimension_numbers<[1], [0], [0], [1], [0, 0, 1, 1], [], []>} : vector<8x128xf32>, vector<128x128xf32>, vector<8x128xf32> -> vector<8x128xf32>
    %7 = arith.addf %4, %6 : vector<8x128xf32>
    %c0_6 = arith.constant 0 : index
    %c0_7 = arith.constant 0 : index
    %8 = vector.load %arg10[%c0_6, %c0_7] : memref<8x128xf32, #tpu.memory_space<vmem>>, vector<8x128xf32>
    tpu.vector_store %arg10[%c0_6, %c0_7], %7 {strides = array<i32>} : memref<8x128xf32, #tpu.memory_space<vmem>>, vector<8x128xf32>,
    %c0_8 = arith.constant 0 : index
    %c0_9 = arith.constant 0 : index
    %9 = vector.load %arg11[%c0_8, %c0_9] : memref<8x128xf32, #tpu.memory_space<vmem>>, vector<8x128xf32>
    %c0_10 = arith.constant 0 : index
    %c0_11 = arith.constant 0 : index
    %10 = vector.load %arg6[%c0_10, %c0_11] : memref<1x128xf32, #tpu.memory_space<vmem>>, vector<1x128xf32>
    %11 = vector.broadcast %10 : vector<1x128xf32> to vector<8x128xf32>
    %12 = arith.mulf %3, %11 : vector<8x128xf32>
    %c0_12 = arith.constant 0 : index
    %c0_13 = arith.constant 0 : index
    %13 = vector.load %arg5[%c0_12, %c0_13] : memref<128x128xf32, #tpu.memory_space<vmem>>, vector<128x128xf32>
    %cst_14 = arith.constant dense<0.000000e+00> : vector<8x128xf32>
    %14 = tpu.matmul %12, %13, %cst_14 {dimension_numbers = #tpu.dot_dimension_numbers<[1], [0], [0], [1], [0, 0, 1, 1], [], []>} : vector<8x128xf32>, vector<128x128xf32>, vector<8x128xf32> -> vector<8x128xf32>
    %15 = arith.addf %9, %14 : vector<8x128xf32>
    %c0_15 = arith.constant 0 : index
    %c0_16 = arith.constant 0 : index
    %16 = vector.load %arg11[%c0_15, %c0_16] : memref<8x128xf32, #tpu.memory_space<vmem>>, vector<8x128xf32>
    tpu.vector_store %arg11[%c0_15, %c0_16], %15 {strides = array<i32>} : memref<8x128xf32, #tpu.memory_space<vmem>>, vector<8x128xf32>,
    %c0_i32_17 = arith.constant 0 : i32
    %17 = arith.cmpi eq, %arg2, %c0_i32_17 : i32
    %18 = arith.extui %17 : i1 to i32
    %c0_i32_18 = arith.constant 0 : i32
    %19 = arith.cmpi ne, %18, %c0_i32_18 : i32
    scf.if %19 {
      %c0_19 = arith.constant 0 : index
      %c0_20 = arith.constant 0 : index
      %20 = vector.load %arg7[%c0_19, %c0_20] : memref<1x128xf32, #tpu.memory_space<vmem>>, vector<1x128xf32>
      %c0_21 = arith.constant 0 : index
      %c0_22 = arith.constant 0 : index
      %21 = vector.load %arg8[%c0_21, %c0_22] : memref<1x128xf32, #tpu.memory_space<vmem>>, vector<1x128xf32>
      %c0_23 = arith.constant 0 : index
      %c0_24 = arith.constant 0 : index
      %22 = vector.load %arg10[%c0_23, %c0_24] : memref<8x128xf32, #tpu.memory_space<vmem>>, vector<8x128xf32>
      %c0_25 = arith.constant 0 : index
      %c0_26 = arith.constant 0 : index
      %23 = vector.load %arg11[%c0_25, %c0_26] : memref<8x128xf32, #tpu.memory_space<vmem>>, vector<8x128xf32>
      %24 = vector.broadcast %20 : vector<1x128xf32> to vector<8x128xf32>
      %25 = arith.mulf %24, %23 : vector<8x128xf32>
      %26 = arith.addf %22, %25 : vector<8x128xf32>
      %27 = vector.broadcast %21 : vector<1x128xf32> to vector<8x128xf32>
      %28 = arith.addf %26, %27 : vector<8x128xf32>
      %c0_27 = arith.constant 0 : index
      %c0_28 = arith.constant 0 : index
      %29 = vector.load %arg9[%c0_27, %c0_28] : memref<8x128xf32, #tpu.memory_space<vmem>>, vector<8x128xf32>
      tpu.vector_store %arg9[%c0_27, %c0_28], %28 {strides = array<i32>} : memref<8x128xf32, #tpu.memory_space<vmem>>, vector<8x128xf32>,
    } else {
    }
    return
  }
  func.func @transform_0(%arg0: i32, %arg1: i32, %arg2: i32) -> (i32, i32) {
    %c0_i32 = arith.constant 0 : i32
    return %arg0, %arg2 : i32, i32
  }
  func.func @transform_1(%arg0: i32, %arg1: i32, %arg2: i32) -> (i32, i32) {
    %c0_i32 = arith.constant 0 : i32
    return %arg2, %arg1 : i32, i32
  }
  func.func @transform_2(%arg0: i32, %arg1: i32, %arg2: i32) -> (i32, i32) {
    %c0_i32 = arith.constant 0 : i32
    return %arg2, %arg1 : i32, i32
  }
  func.func @transform_3(%arg0: i32, %arg1: i32, %arg2: i32) -> (i32, i32) {
    %c0_i32 = arith.constant 0 : i32
    %c0_i32_0 = arith.constant 0 : i32
    return %c0_i32, %arg2 : i32, i32
  }
  func.func @transform_4(%arg0: i32, %arg1: i32, %arg2: i32) -> (i32, i32) {
    %c0_i32 = arith.constant 0 : i32
    %c0_i32_0 = arith.constant 0 : i32
    return %c0_i32, %arg1 : i32, i32
  }
  func.func @transform_5(%arg0: i32, %arg1: i32, %arg2: i32) -> (i32, i32) {
    %c0_i32 = arith.constant 0 : i32
    %c0_i32_0 = arith.constant 0 : i32
    return %c0_i32, %arg1 : i32, i32
  }
  func.func @transform_6(%arg0: i32, %arg1: i32, %arg2: i32) -> (i32, i32) {
    %c0_i32 = arith.constant 0 : i32
    return %arg0, %arg1 : i32, i32
  }
}

</mosaic_0001>

<llo_original>
// kernel: tpu_custom_call.1
$region0: #{tpu_custom_call.1}
  #allocation0 [shape = 'u32[]', space=smem, size = 0x4, offset = 0x4, fixed_abs, tag = 'smem constant byte address 0x4 - core index']
  #allocation1 [shape = 'u32[144,128]{1,0:T(1,128)}', space=vmem, size = 0x12000, scoped, tag = 'internal scratch']
  #allocation2 [shape = 'f32[8,128]{1,0:T(8,128)}', space=vmem, size = 0x1000, scoped, tag = 'scratch operand']
  #allocation3 [shape = 'f32[8,128]{1,0:T(8,128)}', space=vmem, size = 0x1000, scoped, tag = 'scratch operand']
  %s0 = inlined_call_operand.hbm [shape: f32[8,128], index: 0, kind: input, shape index: {}]
  %s1 = inlined_call_operand.hbm [shape: f32[128,128], index: 1, kind: input, shape index: {}]
  %s2 = inlined_call_operand.hbm [shape: f32[128,128], index: 2, kind: input, shape index: {}]
  %s3 = inlined_call_operand.vmem [shape: f32[1,128], index: 3, kind: input, shape index: {}]
  %s4 = inlined_call_operand.vmem [shape: f32[1,128], index: 4, kind: input, shape index: {}]
  %s5 = inlined_call_operand.vmem [shape: f32[1,128], index: 5, kind: input, shape index: {}]
  %s6 = inlined_call_operand.hbm [shape: f32[8,128], index: 6, kind: output, shape index: {}]
  %s7 = sld [smem:[#allocation0]]
  $region54: #{tpu_custom_call.1} parent=0
    _
  %s9 = ssub.s32 1, %s7
  %s10 = scalar_select 0, %s9, %s7
  $region1: #{tpu_custom_call.1} parent=0
    #allocation4 [shape = 'u8[4096]{0}', space=vmem, size = 0x1000, scoped, tag = 'input window, operand 0, single buffered']
    #allocation5 [shape = 's32[1]{0}', space=sflag, size = 0x4, scoped, tag = 'scoped memory for tpu_custom_call.1']
    #allocation6 [shape = 's32[1]{0}', space=sflag, size = 0x4, scoped, tag = 'scoped memory for tpu_custom_call.1']
    #allocation7 [shape = 'u8[65536]{0}', space=vmem, size = 0x10000, scoped, tag = 'input window, operand 1, single buffered']
    #allocation8 [shape = 's32[1]{0}', space=sflag, size = 0x4, scoped, tag = 'scoped memory for tpu_custom_call.1']
    #allocation9 [shape = 'u8[65536]{0}', space=vmem, size = 0x10000, scoped, tag = 'input window, operand 2, single buffered']
    #allocation10 [shape = 'u8[4096]{0}', space=vmem, size = 0x1000, scoped, tag = 'output window, operand 0, single buffered']
    %11 = vsyncpa [#allocation5], 0
    %12 = vsyncpa [#allocation8], 0
    %13 = vsyncpa [#allocation6], 0
    // Predicated region
    $region2: #{tpu_custom_call.1} parent=1 // pred_check
      _
    $region3: #{tpu_custom_call.1} parent=1 // pred_check_branch
      %15 = sbr.rel (0) target = $region5
    $region4: #{tpu_custom_call.1} parent=1 // pred_region
      %s17 = ssub.s32 128, 128
      %18 = vsyncadd [#allocation5], %s17
      %s20 = sshll.u32 [#allocation4], 4
      %s21 = int_to_ptr.vmem [resolvable:$true] %s20
      %23 = dma.hbm_to_vmem [thread:$0]  %s0, 128, %s21, [#allocation5]
    $region5: #{tpu_custom_call.1} parent=1 // pred_fallthru
      _
    // Predicated region
    $region6: #{tpu_custom_call.1} parent=1 // pred_check
      _
    $region7: #{tpu_custom_call.1} parent=1 // pred_check_branch
      %25 = sbr.rel (0) target = $region9
    $region8: #{tpu_custom_call.1} parent=1 // pred_region
      %s27 = ssub.s32 2048, 2048
      %28 = vsyncadd [#allocation8], %s27
      %s29 = sshll.u32 [#allocation7], 4
      %s30 = int_to_ptr.vmem [resolvable:$true] %s29
      %35 = dma.hbm_to_vmem [thread:$0]  %s1, 2048, %s30, [#allocation8], 128, 128, 8
    $region9: #{tpu_custom_call.1} parent=1 // pred_fallthru
      _
    // Predicated region
    $region10: #{tpu_custom_call.1} parent=1 // pred_check
      _
    $region11: #{tpu_custom_call.1} parent=1 // pred_check_branch
      %37 = sbr.rel (0) target = $region13
    $region12: #{tpu_custom_call.1} parent=1 // pred_region
      %s39 = ssub.s32 2048, 2048
      %40 = vsyncadd [#allocation8], %s39
      %s41 = sshll.u32 [#allocation9], 4
      %s42 = int_to_ptr.vmem [resolvable:$true] %s41
      %47 = dma.hbm_to_vmem [thread:$0]  %s2, 2048, %s42, [#allocation8], 128, 128, 8
    $region13: #{tpu_custom_call.1} parent=1 // pred_fallthru
      _
    // Predicated region
    $region14: #{tpu_custom_call.1} parent=1 // pred_check
      _
    $region15: #{tpu_custom_call.1} parent=1 // pred_check_branch
      %49 = sbr.rel (0) target = $region17
    $region16: #{tpu_custom_call.1} parent=1 // pred_region
      _
    $region17: #{tpu_custom_call.1} parent=1 // pred_fallthru
      _
    // Predicated region
    $region18: #{tpu_custom_call.1} parent=1 // pred_check
      _
    $region19: #{tpu_custom_call.1} parent=1 // pred_check_branch
      %51 = sbr.rel (0) target = $region21
    $region20: #{tpu_custom_call.1} parent=1 // pred_region
      _
    $region21: #{tpu_custom_call.1} parent=1 // pred_fallthru
      _
    // Predicated region
    $region22: #{tpu_custom_call.1} parent=1 // pred_check
      _
    $region23: #{tpu_custom_call.1} parent=1 // pred_check_branch
      %53 = sbr.rel (0) target = $region25
    $region24: #{tpu_custom_call.1} parent=1 // pred_region
      _
    $region25: #{tpu_custom_call.1} parent=1 // pred_fallthru
      _
    // Predicated region
    $region26: #{tpu_custom_call.1} parent=1 // pred_check
      _
    $region27: #{tpu_custom_call.1} parent=1 // pred_check_branch
      %55 = sbr.rel (0) target = $region29
    $region28: #{tpu_custom_call.1} parent=1 // pred_region
      %56 = dma.done [#allocation5], 128
    $region29: #{tpu_custom_call.1} parent=1 // pred_fallthru
      _
    // Predicated region
    $region30: #{tpu_custom_call.1} parent=1 // pred_check
      _
    $region31: #{tpu_custom_call.1} parent=1 // pred_check_branch
      %58 = sbr.rel (0) target = $region33
    $region32: #{tpu_custom_call.1} parent=1 // pred_region
      %59 = dma.done [#allocation8], 2048
    $region33: #{tpu_custom_call.1} parent=1 // pred_fallthru
      _
    // Predicated region
    $region34: #{tpu_custom_call.1} parent=1 // pred_check
      _
    $region35: #{tpu_custom_call.1} parent=1 // pred_check_branch
      %61 = sbr.rel (0) target = $region37
    $region36: #{tpu_custom_call.1} parent=1 // pred_region
      %62 = dma.done [#allocation8], 2048
    $region37: #{tpu_custom_call.1} parent=1 // pred_fallthru
      _
    %p63 = scmp.eq.s32.totalorder 0, 0
    // Predicated region
    $region38: #{tpu_custom_call.1} parent=1 // pred_check
      %p64 = pneg %p63
    $region39: #{tpu_custom_call.1} parent=1 // pred_check_branch
      %66 = sbr.rel (%p64) target = $region41
    $region40: #{tpu_custom_call.1} parent=1 // pred_region
      %67 = vst [vmem:[#allocation2] sm:$0xff] 0.0
      %68 = vst [vmem:[#allocation3] sm:$0xff] 0.0
    $region41: #{tpu_custom_call.1} parent=1 // pred_fallthru
      _
    %v69 = vld [vmem:[#allocation4] sm:$0xff]
    %v70 = vld [vmem:[#allocation2] sm:$0xff]
    %v71 = vld [vmem:[#allocation7] sm:$0xff]
    %v72 = vld [vmem:[#allocation7 + $0x8] sm:$0xff]
    %v73 = vld [vmem:[#allocation7 + $0x10] sm:$0xff]
    %v74 = vld [vmem:[#allocation7 + $0x18] sm:$0xff]
    %v75 = vld [vmem:[#allocation7 + $0x20] sm:$0xff]
    %v76 = vld [vmem:[#allocation7 + $0x28] sm:$0xff]
    %v77 = vld [vmem:[#allocation7 + $0x30] sm:$0xff]
    %v78 = vld [vmem:[#allocation7 + $0x38] sm:$0xff]
    %v79 = vld [vmem:[#allocation7 + $0x40] sm:$0xff]
    %v80 = vld [vmem:[#allocation7 + $0x48] sm:$0xff]
    %v81 = vld [vmem:[#allocation7 + $0x50] sm:$0xff]
    %v82 = vld [vmem:[#allocation7 + $0x58] sm:$0xff]
    %v83 = vld [vmem:[#allocation7 + $0x60] sm:$0xff]
    %v84 = vld [vmem:[#allocation7 + $0x68] sm:$0xff]
    %v85 = vld [vmem:[#allocation7 + $0x70] sm:$0xff]
    %v86 = vld [vmem:[#allocation7 + $0x78] sm:$0xff]
    %87 = vmatprep.subr.mxu0 0.0
    %88 = vmatpush1.msra.mxu0 %v71
    %89 = vmatprep.subr.mxu0 0.0
    %90 = vmatpush1.msra.mxu0 %v72
    %91 = vmatprep.subr.mxu0 0.0
    %92 = vmatpush1.msra.mxu0 %v73
    %93 = vmatprep.subr.mxu0 0.0
    %94 = vmatpush1.msra.mxu0 %v74
    %95 = vmatprep.subr.mxu0 0.0
    %96 = vmatpush1.msra.mxu0 %v75
    %97 = vmatprep.subr.mxu0 0.0
    %98 = vmatpush1.msra.mxu0 %v76
    %99 = vmatprep.subr.mxu0 0.0
    %100 = vmatpush1.msra.mxu0 %v77
    %101 = vmatprep.subr.mxu0 0.0
    %102 = vmatpush1.msra.mxu0 %v78
    %103 = vmatprep.subr.mxu0 0.0
    %104 = vmatpush1.msra.mxu0 %v79
    %105 = vmatprep.subr.mxu0 0.0
    %106 = vmatpush1.msra.mxu0 %v80
    %107 = vmatprep.subr.mxu0 0.0
    %108 = vmatpush1.msra.mxu0 %v81
    %109 = vmatprep.subr.mxu0 0.0
    %110 = vmatpush1.msra.mxu0 %v82
    %111 = vmatprep.subr.mxu0 0.0
    %112 = vmatpush1.msra.mxu0 %v83
    %113 = vmatprep.subr.mxu0 0.0
    %114 = vmatpush1.msra.mxu0 %v84
    %115 = vmatprep.subr.mxu0 0.0
    %116 = vmatpush1.msra.mxu0 %v85
    %117 = vmatprep.subr.mxu0 0.0
    %118 = vmatpush1.msra.mxu0 %v86
    %119 = vmatprep.subr.mxu0 0.0
    %120 = vmatpush1.msra.mxu0 0.0
    %121 = vmatprep.subr.mxu0 0.0
    %122 = vmatpush1.msra.mxu0 0.0
    %123 = vmatprep.subr.mxu0 0.0
    %124 = vmatpush1.msra.mxu0 0.0
    %125 = vmatprep.subr.mxu0 0.0
    %126 = vmatpush1.msra.mxu0 0.0
    %127 = vmatprep.subr.mxu0 0.0
    %128 = vmatpush1.msra.mxu0 0.0
    %129 = vmatprep.subr.mxu0 0.0
    %130 = vmatpush1.msra.mxu0 0.0
    %131 = vmatprep.subr.mxu0 0.0
    %132 = vmatpush1.msra.mxu0 0.0
    %133 = vmatprep.subr.mxu0 0.0
    %134 = vmatpush1.msra.mxu0 0.0
    %135 = vmatprep.subr.mxu0 0.0
    %136 = vmatpush1.msra.mxu0 0.0
    %137 = vmatprep.subr.mxu0 0.0
    %138 = vmatpush1.msra.mxu0 0.0
    %139 = vmatprep.subr.mxu0 0.0
    %140 = vmatpush1.msra.mxu0 0.0
    %141 = vmatprep.subr.mxu0 0.0
    %142 = vmatpush1.msra.mxu0 0.0
    %143 = vmatprep.subr.mxu0 0.0
    %144 = vmatpush1.msra.mxu0 0.0
    %145 = vmatprep.subr.mxu0 0.0
    %146 = vmatpush1.msra.mxu0 0.0
    %147 = vmatprep.subr.mxu0 0.0
    %148 = vmatpush1.msra.mxu0 0.0
    %149 = vmatprep.subr.mxu0 0.0
    %150 = vmatpush1.msra.mxu0 0.0
    %151 = vmatprep.mubr.f32.mxu0 0.0
    %152 = vmatmul.mubr.f32.gmra.mrb[0].mxu0 %v69
    %v153 = vpop.f32.mrb[0].mxu0
    %v154 = vadd.f32 0.0, %v153
    %v155 = vpop.f32.mrb[0].mxu0
    %156 = vdwg.mxu0
    %v157 = vadd.f32 %v70, %v154
    %158 = vst [vmem:[#allocation2] sm:$0xff] %v157
    %v159 = vld [vmem:[#allocation3] sm:$0xff]
    %v160 = vld [vmem:[%s3] sm:$0x1]
    %v162 = vlaneseq
    %v163 = vshrl.u32 %v162, 7
    %v164 = vsub.s32 0, %v163
    %v165 = vrot.slane %v160, %v164
    %v167 = vmul.f32 %v69, %v165
    %v168 = vld [vmem:[#allocation9] sm:$0xff]
    %v169 = vld [vmem:[#allocation9 + $0x8] sm:$0xff]
    %v170 = vld [vmem:[#allocation9 + $0x10] sm:$0xff]
    %v171 = vld [vmem:[#allocation9 + $0x18] sm:$0xff]
    %v172 = vld [vmem:[#allocation9 + $0x20] sm:$0xff]
    %v173 = vld [vmem:[#allocation9 + $0x28] sm:$0xff]
    %v174 = vld [vmem:[#allocation9 + $0x30] sm:$0xff]
    %v175 = vld [vmem:[#allocation9 + $0x38] sm:$0xff]
    %v176 = vld [vmem:[#allocation9 + $0x40] sm:$0xff]
    %v177 = vld [vmem:[#allocation9 + $0x48] sm:$0xff]
    %v178 = vld [vmem:[#allocation9 + $0x50] sm:$0xff]
    %v179 = vld [vmem:[#allocation9 + $0x58] sm:$0xff]
    %v180 = vld [vmem:[#allocation9 + $0x60] sm:$0xff]
    %v181 = vld [vmem:[#allocation9 + $0x68] sm:$0xff]
    %v182 = vld [vmem:[#allocation9 + $0x70] sm:$0xff]
    %v183 = vld [vmem:[#allocation9 + $0x78] sm:$0xff]
    %184 = vmatprep.subr.mxu0 0.0
    %185 = vmatpush1.msra.mxu0 %v168
    %186 = vmatprep.subr.mxu0 0.0
    %187 = vmatpush1.msra.mxu0 %v169
    %188 = vmatprep.subr.mxu0 0.0
    %189 = vmatpush1.msra.mxu0 %v170
    %190 = vmatprep.subr.mxu0 0.0
    %191 = vmatpush1.msra.mxu0 %v171
    %192 = vmatprep.subr.mxu0 0.0
    %193 = vmatpush1.msra.mxu0 %v172
    %194 = vmatprep.subr.mxu0 0.0
    %195 = vmatpush1.msra.mxu0 %v173
    %196 = vmatprep.subr.mxu0 0.0
    %197 = vmatpush1.msra.mxu0 %v174
    %198 = vmatprep.subr.mxu0 0.0
    %199 = vmatpush1.msra.mxu0 %v175
    %200 = vmatprep.subr.mxu0 0.0
    %201 = vmatpush1.msra.mxu0 %v176
    %202 = vmatprep.subr.mxu0 0.0
    %203 = vmatpush1.msra.mxu0 %v177
    %204 = vmatprep.subr.mxu0 0.0
    %205 = vmatpush1.msra.mxu0 %v178
    %206 = vmatprep.subr.mxu0 0.0
    %207 = vmatpush1.msra.mxu0 %v179
    %208 = vmatprep.subr.mxu0 0.0
    %209 = vmatpush1.msra.mxu0 %v180
    %210 = vmatprep.subr.mxu0 0.0
    %211 = vmatpush1.msra.mxu0 %v181
    %212 = vmatprep.subr.mxu0 0.0
    %213 = vmatpush1.msra.mxu0 %v182
    %214 = vmatprep.subr.mxu0 0.0
    %215 = vmatpush1.msra.mxu0 %v183
    %216 = vmatprep.subr.mxu0 0.0
    %217 = vmatpush1.msra.mxu0 0.0
    %218 = vmatprep.subr.mxu0 0.0
    %219 = vmatpush1.msra.mxu0 0.0
    %220 = vmatprep.subr.mxu0 0.0
    %221 = vmatpush1.msra.mxu0 0.0
    %222 = vmatprep.subr.mxu0 0.0
    %223 = vmatpush1.msra.mxu0 0.0
    %224 = vmatprep.subr.mxu0 0.0
    %225 = vmatpush1.msra.mxu0 0.0
    %226 = vmatprep.subr.mxu0 0.0
    %227 = vmatpush1.msra.mxu0 0.0
    %228 = vmatprep.subr.mxu0 0.0
    %229 = vmatpush1.msra.mxu0 0.0
    %230 = vmatprep.subr.mxu0 0.0
    %231 = vmatpush1.msra.mxu0 0.0
    %232 = vmatprep.subr.mxu0 0.0
    %233 = vmatpush1.msra.mxu0 0.0
    %234 = vmatprep.subr.mxu0 0.0
    %235 = vmatpush1.msra.mxu0 0.0
    %236 = vmatprep.subr.mxu0 0.0
    %237 = vmatpush1.msra.mxu0 0.0
    %238 = vmatprep.subr.mxu0 0.0
    %239 = vmatpush1.msra.mxu0 0.0
    %240 = vmatprep.subr.mxu0 0.0
    %241 = vmatpush1.msra.mxu0 0.0
    %242 = vmatprep.subr.mxu0 0.0
    %243 = vmatpush1.msra.mxu0 0.0
    %244 = vmatprep.subr.mxu0 0.0
    %245 = vmatpush1.msra.mxu0 0.0
    %246 = vmatprep.subr.mxu0 0.0
    %247 = vmatpush1.msra.mxu0 0.0
    %248 = vmatprep.mubr.f32.mxu0 0.0
    %249 = vmatmul.mubr.f32.gmra.mrb[0].mxu0 %v167
    %v250 = vpop.f32.mrb[0].mxu0
    %v251 = vadd.f32 0.0, %v250
    %v252 = vpop.f32.mrb[0].mxu0
    %253 = vdwg.mxu0
    %v254 = vadd.f32 %v159, %v251
    %255 = vst [vmem:[#allocation3] sm:$0xff] %v254
    // Predicated region
    $region42: #{tpu_custom_call.1} parent=1 // pred_check
      %p256 = pneg %p63
    $region43: #{tpu_custom_call.1} parent=1 // pred_check_branch
      %258 = sbr.rel (%p256) target = $region45
    $region44: #{tpu_custom_call.1} parent=1 // pred_region
      %v259 = vld [vmem:[%s4] sm:$0x1]
      %v260 = vld [vmem:[%s5] sm:$0x1]
      %v261 = vld [vmem:[#allocation2] sm:$0xff]
      %v262 = vld [vmem:[#allocation3] sm:$0xff]
      %v264 = vlaneseq
      %v265 = vshrl.u32 %v264, 7
      %v266 = vsub.s32 0, %v265
      %v267 = vrot.slane %v259, %v266
      %v269 = vmul.f32 %v267, %v262
      %v270 = vadd.f32 %v261, %v269
      %v272 = vlaneseq
      %v273 = vshrl.u32 %v272, 7
      %v274 = vsub.s32 0, %v273
      %v275 = vrot.slane %v260, %v274
      %v277 = vadd.f32 %v270, %v275
      %278 = vst [vmem:[#allocation10] sm:$0xff] %v277
    $region45: #{tpu_custom_call.1} parent=1 // pred_fallthru
      _
    // Predicated region
    $region46: #{tpu_custom_call.1} parent=1 // pred_check
      _
    $region47: #{tpu_custom_call.1} parent=1 // pred_check_branch
      %280 = sbr.rel (0) target = $region49
    $region48: #{tpu_custom_call.1} parent=1 // pred_region
      %s282 = ssub.s32 128, 128
      %283 = vsyncadd [#allocation6], %s282
      %s285 = sshll.u32 [#allocation10], 4
      %s286 = int_to_ptr.vmem [resolvable:$true] %s285
      %288 = dma.vmem_to_hbm [thread:$0]  %s286, 128, %s6, [#allocation6]
    $region49: #{tpu_custom_call.1} parent=1 // pred_fallthru
      _
    // Predicated region
    $region50: #{tpu_custom_call.1} parent=1 // pred_check
      _
    $region51: #{tpu_custom_call.1} parent=1 // pred_check_branch
      %290 = sbr.rel (0) target = $region53
    $region52: #{tpu_custom_call.1} parent=1 // pred_region
      %291 = dma.done [#allocation6], 128
    $region53: #{tpu_custom_call.1} parent=1 // pred_fallthru
      _
    %292 = vsyncpa [#allocation5], 1
    %293 = vsyncpa [#allocation8], 1
    %294 = vsyncpa [#allocation6], 1

</llo_original>
